<compile_context>
chip_gen: v6e
topology: v6e:2x2x1
jax: 0.10.0
libtpu: 0.0.40
codegen_flags: <defaults>
</compile_context>

<pallas_src>
import jax
import jax.numpy as jnp
from jax import lax
from jax.experimental import pallas as pl
from jax.experimental.pallas import tpu as pltpu


def _round_up(x, m):
    return (x + m - 1) // m * m


# ---------------------------------------------------------------------------
# Path 1: small vocab — VMEM-resident table, one-hot matmul gather (MXU).
# ---------------------------------------------------------------------------
def _onehot_kernel(idx_ref, table_ref, out_ref):
    """idx_ref (TB, 1) int32 | table_ref (V, DB) | out_ref (TB, DB)."""
    tb = out_ref.shape[0]
    v = table_ref.shape[0]
    ids = idx_ref[...]                                  # (TB, 1)
    col = lax.broadcasted_iota(jnp.int32, (tb, v), 1)   # (TB, V) lane ids
    onehot = (ids == col).astype(table_ref.dtype)       # one 1.0 per row
    out_ref[...] = jnp.dot(
        onehot, table_ref[...], preferred_element_type=jnp.float32
    ).astype(out_ref.dtype)


# ---------------------------------------------------------------------------
# Path 2: large vocab — HBM-resident table, async-DMA row gather.
# ---------------------------------------------------------------------------
_N_INFLIGHT = 8  # outstanding row DMAs per token block


def _hbm_gather_kernel(idx_ref, table_hbm, out_ref, gbuf, sem):
    """idx_ref (Ntok,) int32 in SMEM (scalar prefetch) | table_hbm (V, D) HBM
    out_ref (TB, D) VMEM | gbuf (TB, D) VMEM scratch | sem: DMA x _N_INFLIGHT."""
    tb = out_ref.shape[0]
    base = pl.program_id(0) * tb              # hoisted out of the loops
    nbuf = min(_N_INFLIGHT, tb)               # tb is a static multiple of 8

    def start_row(tok, row, slot):
        pltpu.make_async_copy(
            table_hbm.at[pl.ds(tok, 1), :],
            gbuf.at[pl.ds(row, 1), :],
            sem.at[slot],
        ).start()

    def wait_row(row, slot):
        # Static source: the wait only needs the transfer size + semaphore.
        pltpu.make_async_copy(
            table_hbm.at[pl.ds(0, 1), :],
            gbuf.at[pl.ds(row, 1), :],
            sem.at[slot],
        ).wait()

    # Prime the pipeline with nbuf outstanding row DMAs (static unroll).
    for t in range(nbuf):
        start_row(idx_ref[base + t], t, t)

    # Steady state: read the next token id from SMEM *before* the wait, wait
    # for row t (frees its semaphore slot), then prefetch row t + nbuf.
    def body(t, carry):
        slot = t % nbuf
        do_next = t + nbuf < tb
        # Clamped read: never index SMEM past the prefetched id buffer.
        nxt_tok = idx_ref[jnp.where(do_next, base + t + nbuf, base + t)]
        wait_row(t, slot)

        @pl.when(do_next)
        def _():
            start_row(nxt_tok, t + nbuf, slot)

        return carry

    lax.fori_loop(0, tb, body, 0)

    # Single lane/sublane-dense store of the whole gathered tile.
    out_ref[...] = gbuf[...]


# ---------------------------------------------------------------------------
# Wrapper
# ---------------------------------------------------------------------------
def embedding_lookup(indices, table, *, token_block=256, max_vmem_vocab=2048):
    """Embedding gather: integer `indices` (any shape) -> indices.shape + (D,)."""
    V, D = table.shape
    itemsize = jnp.dtype(table.dtype).itemsize
    sublane = max(8, 32 // itemsize)      # f32: 8, bf16: 16, int8: 32

    in_shape = indices.shape
    flat = indices.reshape(-1).astype(jnp.int32)
    n_tokens = flat.shape[0]
    # Clamp ids: VMEM/DMA accesses have no runtime bounds check on TPU.
    flat = jnp.clip(flat, 0, V - 1)

    tb = max(sublane, min(token_block, _round_up(n_tokens, sublane)))
    tb = _round_up(tb, sublane)
    n_pad = _round_up(n_tokens, tb)
    if n_pad != n_tokens:
        flat = jnp.pad(flat, (0, n_pad - n_tokens))
    n_blocks = n_pad // tb

    use_vmem_table = (
        V <= max_vmem_vocab and V * min(D, 512) * itemsize <= (8 << 20)
    )

    if use_vmem_table:
        # D-tile the resident table so its VMEM block stays small.
        db = D if (D <= 1024 or D % 512 != 0) else 512
        n_dblocks = D // db
        need = (2 * V * db * itemsize          # double-buffered table tiles
                + 2 * tb * db * itemsize       # double-buffered output tiles
                + 2 * tb * 128 * 4             # id tiles (lane-padded)
                + tb * max(V, 128) * itemsize  # one-hot intermediate
                + (4 << 20))                   # headroom
        out_flat = pl.pallas_call(
            _onehot_kernel,
            out_shape=jax.ShapeDtypeStruct((n_pad, D), table.dtype),
            grid=(n_blocks, n_dblocks),
            in_specs=[
                pl.BlockSpec((tb, 1), lambda i, j: (i, 0)),
                # TODO(synk): pipeline_mode=pl.Buffered(1) would single-buffer
                # this grid-invariant table tile (halves its VMEM footprint,
                # relevant on v7x); only taken when V is small, so double
                # buffering is affordable here.
                pl.BlockSpec((V, db), lambda i, j: (0, j)),
            ],
            out_specs=pl.BlockSpec((tb, db), lambda i, j: (i, j)),
            compiler_params=pltpu.CompilerParams(
                dimension_semantics=("parallel", "parallel"),
                vmem_limit_bytes=int(min(max(need, 16 << 20), 48 << 20)),
            ),
        )(flat.reshape(n_pad, 1), table)
    else:
        # Scalar-prefetched ids live in SMEM: keep the footprint bounded.
        assert n_pad <= (1 << 18), (
            "token count too large for one scalar-prefetch buffer; split the "
            "lookup into chunks of <= 262144 tokens")
        need = 3 * tb * D * itemsize + (4 << 20)
        out_flat = pl.pallas_call(
            _hbm_gather_kernel,
            out_shape=jax.ShapeDtypeStruct((n_pad, D), table.dtype),
            grid_spec=pltpu.PrefetchScalarGridSpec(
                num_scalar_prefetch=1,
                grid=(n_blocks,),
                in_specs=[pl.BlockSpec(memory_space=pl.ANY)],  # table stays in HBM
                out_specs=pl.BlockSpec((tb, D), lambda i, idx: (i, 0)),
                scratch_shapes=[
                    pltpu.VMEM((tb, D), table.dtype),
                    pltpu.SemaphoreType.DMA((_N_INFLIGHT,)),
                ],
            ),
            compiler_params=pltpu.CompilerParams(
                dimension_semantics=("parallel",),
                vmem_limit_bytes=int(min(max(need, 16 << 20), 48 << 20)),
            ),
        )(flat, table)

    out = out_flat[:n_tokens]
    return out.reshape(*in_shape, D)


class EmbeddingPackable:
    """JAX/Pallas port of the PyTorch EmbeddingPackable wrapper.

    Plain integer arrays -> embedding lookup via the Pallas kernel (matches
    `self.embd_layer(input)`).  The PackedSequence branch of the PyTorch module
    pads, embeds, then re-packs; here a "packed" input is modelled as
    (padded_ids, lengths) and we return (padded_embeddings, lengths).
    """
    # TODO(synk): torch PackedSequence re-packing (pack_padded_sequence) and
    # nn.Embedding padding_idx semantics have no Pallas equivalent here.

    def __init__(self, table):
        self.table = table

    def __call__(self, indices, lengths=None):
        out = embedding_lookup(indices, self.table)
        if lengths is not None:
            return out, lengths
        return out


if __name__ == "__main__":
    key = jax.random.PRNGKey(0)
    k_tab, k_idx, k_tab2, k_idx2 = jax.random.split(key, 4)

    # --- small-vocab path (VMEM-resident table, one-hot MXU gather) ---
    VOCAB, EMBED, B, S = 64, 128, 2, 8
    table = jax.random.normal(k_tab, (VOCAB, EMBED), dtype=jnp.float32)
    indices = jax.random.randint(k_idx, (B, S), 0, VOCAB, dtype=jnp.int32)

    model = EmbeddingPackable(table)
    out = jax.block_until_ready(model(indices))
    ref = jnp.take(table, indices, axis=0)
    assert out.shape == (B, S, EMBED)
    assert jnp.allclose(out, ref, atol=1e-5), "one-hot path mismatch"

    # packed-sequence-style call (padded ids + lengths)
    lengths = jnp.array([S, S - 3], dtype=jnp.int32)
    out_p, lens_p = model(indices, lengths)
    out_p = jax.block_until_ready(out_p)
    assert out_p.shape == (B, S, EMBED) and lens_p.shape == (B,)

    # --- large-vocab path (HBM-resident table, async-DMA row gather) ---
    VOCAB2 = 4096
    table2 = jax.random.normal(k_tab2, (VOCAB2, EMBED), dtype=jnp.float32)
    indices2 = jax.random.randint(k_idx2, (B, S), 0, VOCAB2, dtype=jnp.int32)
    out2 = jax.block_until_ready(embedding_lookup(indices2, table2))
    ref2 = jnp.take(table2, indices2, axis=0)
    assert jnp.allclose(out2, ref2), "HBM gather path mismatch"

    print("KERNEL_OK")
</pallas_src>

<mosaic_0001>
module attributes {stable_mosaic.version = 11 : i64} {
  func.func @_onehot_kernel(%arg0: i32, %arg1: i32, %arg2: memref<16x1xi32, #tpu.memory_space<vmem>>, %arg3: memref<64x128xf32, #tpu.memory_space<vmem>>, %arg4: memref<16x128xf32, #tpu.memory_space<vmem>>) attributes {dimension_semantics = [#tpu.dimension_semantics<parallel>, #tpu.dimension_semantics<parallel>], iteration_bounds = array<i64: 1, 1>, scalar_prefetch = 0 : i64, scratch_operands = 0 : i64, tpu.core_type = #tpu.core_type<tc>, window_params = [{transform_indices = @transform_0, window_bounds = array<i64: 16, 1>}, {transform_indices = @transform_1, window_bounds = array<i64: 64, 128>}, {transform_indices = @transform_2, window_bounds = array<i64: 16, 128>}]} {
    %c0 = arith.constant 0 : index
    %c0_0 = arith.constant 0 : index
    %0 = vector.load %arg2[%c0, %c0_0] : memref<16x1xi32, #tpu.memory_space<vmem>>, vector<16x1xi32>
    %1 = tpu.iota {dimensions = array<i32: 1>} : vector<16x64xi32>
    %2 = vector.broadcast %0 : vector<16x1xi32> to vector<16x64xi32>
    %3 = arith.cmpi eq, %2, %1 : vector<16x64xi32>
    %4 = arith.extui %3 : vector<16x64xi1> to vector<16x64xi32>
    %5 = arith.sitofp %4 : vector<16x64xi32> to vector<16x64xf32>
    %c0_1 = arith.constant 0 : index
    %c0_2 = arith.constant 0 : index
    %6 = vector.load %arg3[%c0_1, %c0_2] : memref<64x128xf32, #tpu.memory_space<vmem>>, vector<64x128xf32>
    %cst = arith.constant dense<0.000000e+00> : vector<16x128xf32>
    %7 = tpu.matmul %5, %6, %cst {dimension_numbers = #tpu.dot_dimension_numbers<[1], [0], [0], [1], [0, 0, 1, 1], [], []>} : vector<16x64xf32>, vector<64x128xf32>, vector<16x128xf32> -> vector<16x128xf32>
    %c0_3 = arith.constant 0 : index
    %c0_4 = arith.constant 0 : index
    %8 = vector.load %arg4[%c0_3, %c0_4] : memref<16x128xf32, #tpu.memory_space<vmem>>, vector<16x128xf32>
    tpu.vector_store %arg4[%c0_3, %c0_4], %7 {strides = array<i32>} : memref<16x128xf32, #tpu.memory_space<vmem>>, vector<16x128xf32>,
    return
  }
  func.func @transform_0(%arg0: i32, %arg1: i32) -> (i32, i32) {
    %c0_i32 = arith.constant 0 : i32
    %c0_i32_0 = arith.constant 0 : i32
    return %arg0, %c0_i32 : i32, i32
  }
  func.func @transform_1(%arg0: i32, %arg1: i32) -> (i32, i32) {
    %c0_i32 = arith.constant 0 : i32
    %c0_i32_0 = arith.constant 0 : i32
    return %c0_i32, %arg1 : i32, i32
  }
  func.func @transform_2(%arg0: i32, %arg1: i32) -> (i32, i32) {
    %c0_i32 = arith.constant 0 : i32
    return %arg0, %arg1 : i32, i32
  }
}

</mosaic_0001>

<llo_original>
// kernel: tpu_custom_call.1
$region0: #{tpu_custom_call.1}
  #allocation0 [shape = 'u32[]', space=smem, size = 0x4, offset = 0x4, fixed_abs, tag = 'smem constant byte address 0x4 - core index']
  #allocation1 [shape = 'u32[144,128]{1,0:T(1,128)}', space=vmem, size = 0x12000, scoped, tag = 'internal scratch']
  %s0 = inlined_call_operand.vmem [shape: s32[16,1], index: 0, kind: input, shape index: {}]
  %s1 = inlined_call_operand.hbm [shape: f32[64,128], index: 1, kind: input, shape index: {}]
  %s2 = inlined_call_operand.hbm [shape: f32[16,128], index: 2, kind: output, shape index: {}]
  %s3 = sld [smem:[#allocation0]]
  $region22: #{tpu_custom_call.1} parent=0
    _
  %s5 = ssub.s32 1, %s3
  %s6 = scalar_select 0, %s5, %s3
  $region1: #{tpu_custom_call.1} parent=0
    #allocation2 [shape = 'u8[32768]{0}', space=vmem, size = 0x8000, scoped, tag = 'input window, operand 1, single buffered']
    #allocation3 [shape = 's32[1]{0}', space=sflag, size = 0x4, scoped, tag = 'scoped memory for tpu_custom_call.1']
    #allocation4 [shape = 's32[1]{0}', space=sflag, size = 0x4, scoped, tag = 'scoped memory for tpu_custom_call.1']
    #allocation5 [shape = 'u8[8192]{0}', space=vmem, size = 0x2000, scoped, tag = 'output window, operand 0, single buffered']
    %7 = vsyncpa [#allocation3], 0
    %8 = vsyncpa [#allocation4], 0
    // Predicated region
    $region2: #{tpu_custom_call.1} parent=1 // pred_check
      _
    $region3: #{tpu_custom_call.1} parent=1 // pred_check_branch
      %10 = sbr.rel (0) target = $region5
    $region4: #{tpu_custom_call.1} parent=1 // pred_region
      _
    $region5: #{tpu_custom_call.1} parent=1 // pred_fallthru
      _
    // Predicated region
    $region6: #{tpu_custom_call.1} parent=1 // pred_check
      _
    $region7: #{tpu_custom_call.1} parent=1 // pred_check_branch
      %12 = sbr.rel (0) target = $region9
    $region8: #{tpu_custom_call.1} parent=1 // pred_region
      %s14 = ssub.s32 1024, 1024
      %15 = vsyncadd [#allocation3], %s14
      %s16 = sshll.u32 [#allocation2], 4
      %s17 = int_to_ptr.vmem [resolvable:$true] %s16
      %22 = dma.hbm_to_vmem [thread:$0]  %s1, 1024, %s17, [#allocation3], 128, 128, 8
    $region9: #{tpu_custom_call.1} parent=1 // pred_fallthru
      _
    // Predicated region
    $region10: #{tpu_custom_call.1} parent=1 // pred_check
      _
    $region11: #{tpu_custom_call.1} parent=1 // pred_check_branch
      %24 = sbr.rel (0) target = $region13
    $region12: #{tpu_custom_call.1} parent=1 // pred_region
      %25 = dma.done [#allocation3], 1024
    $region13: #{tpu_custom_call.1} parent=1 // pred_fallthru
      _
    %v26 = vld [vmem:[%s0] sm:$0xff]
    %v27 = vld [vmem:[%s0 + $0x8] sm:$0xff]
    %v28 = vlaneseq
    %v29 = vand.u32 %v28, 127
    %30 = vset.pattern.permute.xlu0 0
    %31 = vperm.xlu0 %30, %v26
    %v32 = vpop.permute.xlu0 %31
    %33 = vset.pattern.permute.xlu0 0
    %34 = vperm.xlu0 %33, %v27
    %v35 = vpop.permute.xlu0 %34
    %vm36 = vcmp.eq.s32.totalorder %v32, %v29
    %vm37 = vcmp.eq.s32.totalorder %v35, %v29
    %v38 = vsel %vm36, 1, 0
    %v39 = vsel %vm37, 1, 0
    %v40 = vcvt.s32.f32 %v38
    %v41 = vcvt.s32.f32 %v39
    %v42 = vld [vmem:[#allocation2] sm:$0xff]
    %v43 = vld [vmem:[#allocation2 + $0x8] sm:$0xff]
    %v44 = vld [vmem:[#allocation2 + $0x10] sm:$0xff]
    %v45 = vld [vmem:[#allocation2 + $0x18] sm:$0xff]
    %v46 = vld [vmem:[#allocation2 + $0x20] sm:$0xff]
    %v47 = vld [vmem:[#allocation2 + $0x28] sm:$0xff]
    %v48 = vld [vmem:[#allocation2 + $0x30] sm:$0xff]
    %v49 = vld [vmem:[#allocation2 + $0x38] sm:$0xff]
    %vm50 = vcmask 523264
    %v52 = vsel %vm50, %v40, 0
    %v55 = vsel %vm50, %v41, 0
    %57 = vmatprep.subr.mxu0 0.0
    %58 = vmatpush1.msra.mxu0 0.0
    %59 = vmatprep.subr.mxu0 0.0
    %60 = vmatpush1.msra.mxu0 0.0
    %61 = vmatprep.subr.mxu0 0.0
    %62 = vmatpush1.msra.mxu0 0.0
    %63 = vmatprep.subr.mxu0 0.0
    %64 = vmatpush1.msra.mxu0 0.0
    %65 = vmatprep.subr.mxu0 0.0
    %66 = vmatpush1.msra.mxu0 0.0
    %67 = vmatprep.subr.mxu0 0.0
    %68 = vmatpush1.msra.mxu0 0.0
    %69 = vmatprep.subr.mxu0 0.0
    %70 = vmatpush1.msra.mxu0 0.0
    %71 = vmatprep.subr.mxu0 0.0
    %72 = vmatpush1.msra.mxu0 0.0
    %73 = vmatprep.subr.mxu0 0.0
    %74 = vmatpush1.msra.mxu0 %v49
    %75 = vmatprep.subr.mxu0 0.0
    %76 = vmatpush1.msra.mxu0 %v48
    %77 = vmatprep.subr.mxu0 0.0
    %78 = vmatpush1.msra.mxu0 %v47
    %79 = vmatprep.subr.mxu0 0.0
    %80 = vmatpush1.msra.mxu0 %v46
    %81 = vmatprep.subr.mxu0 0.0
    %82 = vmatpush1.msra.mxu0 %v45
    %83 = vmatprep.subr.mxu0 0.0
    %84 = vmatpush1.msra.mxu0 %v44
    %85 = vmatprep.subr.mxu0 0.0
    %86 = vmatpush1.msra.mxu0 %v43
    %87 = vmatprep.subr.mxu0 0.0
    %88 = vmatpush1.msra.mxu0 %v42
    %89 = vmatprep.subr.mxu0 0.0
    %90 = vmatpush2.msra.mxu0 0.0
    %91 = vmatprep.subr.mxu0 0.0
    %92 = vmatpush2.msra.mxu0 0.0
    %93 = vmatprep.subr.mxu0 0.0
    %94 = vmatpush2.msra.mxu0 0.0
    %95 = vmatprep.subr.mxu0 0.0
    %96 = vmatpush2.msra.mxu0 0.0
    %97 = vmatprep.subr.mxu0 0.0
    %98 = vmatpush2.msra.mxu0 0.0
    %99 = vmatprep.subr.mxu0 0.0
    %100 = vmatpush2.msra.mxu0 0.0
    %101 = vmatprep.subr.mxu0 0.0
    %102 = vmatpush2.msra.mxu0 0.0
    %103 = vmatprep.subr.mxu0 0.0
    %104 = vmatpush2.msra.mxu0 0.0
    %105 = vmatprep.subr.mxu0 0.0
    %106 = vmatpush2.msra.mxu0 0.0
    %107 = vmatprep.subr.mxu0 0.0
    %108 = vmatpush2.msra.mxu0 0.0
    %109 = vmatprep.subr.mxu0 0.0
    %110 = vmatpush2.msra.mxu0 0.0
    %111 = vmatprep.subr.mxu0 0.0
    %112 = vmatpush2.msra.mxu0 0.0
    %113 = vmatprep.subr.mxu0 0.0
    %114 = vmatpush2.msra.mxu0 0.0
    %115 = vmatprep.subr.mxu0 0.0
    %116 = vmatpush2.msra.mxu0 0.0
    %117 = vmatprep.subr.mxu0 0.0
    %118 = vmatpush2.msra.mxu0 0.0
    %119 = vmatprep.subr.mxu0 0.0
    %120 = vmatpush2.msra.mxu0 0.0
    %121 = vmatprep.mubr.f32.mxu0 0.0
    %122 = vmatmul.mubr.f32.gmra.mxu0 %v52
    %v123 = vpop.f32.mrf.mxu0
    %v124 = vadd.f32 0.0, %v123
    %v125 = vpop.f32.mrf.mxu0
    %126 = vmatprep.mubr.f32.mxu0 0.0
    %127 = vmatmul.mubr.f32.gmra.mxu0 %v55
    %v128 = vpop.f32.mrf.mxu0
    %v129 = vadd.f32 0.0, %v128
    %v130 = vpop.f32.mrf.mxu0
    %131 = vdwg.mxu0
    %132 = vst [vmem:[#allocation5] sm:$0xff] %v124
    %133 = vst [vmem:[#allocation5 + $0x8] sm:$0xff] %v129
    // Predicated region
    $region14: #{tpu_custom_call.1} parent=1 // pred_check
      _
    $region15: #{tpu_custom_call.1} parent=1 // pred_check_branch
      %135 = sbr.rel (0) target = $region17
    $region16: #{tpu_custom_call.1} parent=1 // pred_region
      %s137 = ssub.s32 256, 256
      %138 = vsyncadd [#allocation4], %s137
      %s139 = sshll.u32 [#allocation5], 4
      %s140 = int_to_ptr.vmem [resolvable:$true] %s139
      %145 = dma.vmem_to_hbm [thread:$0]  %s140, 256, %s2, [#allocation4], 128, 128, 8
    $region17: #{tpu_custom_call.1} parent=1 // pred_fallthru
      _
    // Predicated region
    $region18: #{tpu_custom_call.1} parent=1 // pred_check
      _
    $region19: #{tpu_custom_call.1} parent=1 // pred_check_branch
      %147 = sbr.rel (0) target = $region21
    $region20: #{tpu_custom_call.1} parent=1 // pred_region
      %148 = dma.done [#allocation4], 256
    $region21: #{tpu_custom_call.1} parent=1 // pred_fallthru
      _
    %149 = vsyncpa [#allocation3], 1
    %150 = vsyncpa [#allocation4], 1

</llo_original>
